<compile_context>
chip_gen: v7x
topology: tpu7x:2x2x1
jax: 0.10.0
libtpu: 0.0.40
codegen_flags: <defaults>
</compile_context>

<pallas_src>
import numpy as np
import jax
import jax.numpy as jnp
from jax import lax
from jax.experimental import pallas as pl
from jax.experimental.pallas import tpu as pltpu

BN_EPS = 1e-5
KERNEL_SIZE = 15
PAD = (KERNEL_SIZE - 1) // 2


# ----------------------------------------------------------------------------------
# Fused SpatialGate kernel: one grid step per batch row.
#   wmax_ref, wmean_ref : (L, L) banded conv weights (BN scale folded), VMEM
#   shift_ref           : (1,)   folded conv-bias + BN shift, SMEM scalar
#   x_ref               : (1, C, L) input block, VMEM
#   o_ref               : (1, C, L) gated output block, VMEM
# ----------------------------------------------------------------------------------
def _spatial_gate_kernel(wmax_ref, wmean_ref, shift_ref, x_ref, o_ref):
    x = x_ref[0]                                        # (C, L), f32, L on lanes

    # ---- ChannelPool: max / mean over channels (sublane reduce -> XLU slot) ----
    mx = jnp.max(x, axis=0, keepdims=True)              # (1, L)
    mn = jnp.mean(x, axis=0, keepdims=True)             # (1, L)

    # ---- Conv1d(2->1, K=15, pad=7) + eval-BN as two banded MXU matmuls ----
    z = (jnp.dot(mx, wmax_ref[...], preferred_element_type=jnp.float32)
         + jnp.dot(mn, wmean_ref[...], preferred_element_type=jnp.float32)
         + shift_ref[0])                                 # (1, L)

    # ---- SiLU then sigmoid gate (EUP exp, VPU mul) ----
    silu = z * (1.0 / (1.0 + jnp.exp(-z)))
    gate = 1.0 / (1.0 + jnp.exp(-silu))                  # (1, L)

    # ---- apply gate, broadcast over channels ----
    o_ref[0] = x * gate


def spatial_gate(x, conv_w, conv_b, bn_gamma, bn_beta, bn_mean, bn_var):
    """x: (N, C, L) f32; conv_w: (1, 2, 15) torch Conv1d layout; BN params: (1,)."""
    N, C, L = x.shape

    # Fold eval-mode BN (single channel -> scalars) into the conv weights / a shift.
    s_bn = bn_gamma / jnp.sqrt(bn_var + BN_EPS)                      # (1,)
    shift = (conv_b * s_bn + bn_beta - bn_mean * s_bn).reshape(1).astype(jnp.float32)

    # Banded weight matrices (host-side, once):
    #   out[l] = sum_j pooled[c, j] * w[0, c, j - l + PAD]   (zero outside the band)
    j_idx = jnp.arange(L)[:, None]
    l_idx = jnp.arange(L)[None, :]
    k_idx = j_idx - l_idx + PAD
    valid = (k_idx >= 0) & (k_idx < KERNEL_SIZE)
    k_safe = jnp.clip(k_idx, 0, KERNEL_SIZE - 1)

    def band(c):
        return (jnp.where(valid, conv_w[0, c, k_safe], 0.0) * s_bn[0]).astype(jnp.float32)

    wb_max = band(0)       # (L, L)  -- for the channel-max row of ChannelPool
    wb_mean = band(1)      # (L, L)  -- for the channel-mean row

    return pl.pallas_call(
        _spatial_gate_kernel,
        out_shape=jax.ShapeDtypeStruct((N, C, L), jnp.float32),
        grid=(N,),
        in_specs=[
            pl.BlockSpec((L, L), lambda n: (0, 0)),
            pl.BlockSpec((L, L), lambda n: (0, 0)),
            pl.BlockSpec(memory_space=pltpu.MemorySpace.SMEM),
            pl.BlockSpec((1, C, L), lambda n: (n, 0, 0)),
        ],
        out_specs=pl.BlockSpec((1, C, L), lambda n: (n, 0, 0)),
        compiler_params=pltpu.CompilerParams(dimension_semantics=("parallel",)),
    )(wb_max, wb_mean, shift, x)


# ----------------------------------------------------------------------------------
# Pure-JAX reference mirroring the PyTorch forward (eval mode), for correctness check.
# ----------------------------------------------------------------------------------
def ref_forward(x, conv_w, conv_b, bn_gamma, bn_beta, bn_mean, bn_var):
    mx = jnp.max(x, axis=1, keepdims=True)
    mn = jnp.mean(x, axis=1, keepdims=True)
    pooled = jnp.concatenate([mx, mn], axis=1)                       # (N, 2, L)
    conv = lax.conv_general_dilated(pooled, conv_w, window_strides=(1,),
                                    padding=[(PAD, PAD)],
                                    dimension_numbers=("NCH", "OIH", "NCH"),
                                    precision=lax.Precision.HIGHEST)
    conv = conv + conv_b[None, :, None]
    z = (conv - bn_mean[None, :, None]) / jnp.sqrt(bn_var[None, :, None] + BN_EPS) \
        * bn_gamma[None, :, None] + bn_beta[None, :, None]
    silu = z * jax.nn.sigmoid(z)
    gate = jax.nn.sigmoid(silu)
    return x * gate


if __name__ == "__main__":
    key = jax.random.PRNGKey(0)
    kx, kw, kb, kg, kbe, km, kv = jax.random.split(key, 7)

    N, C, L = 2, 16, 128                                             # small, lane-dense shapes
    x = jax.random.normal(kx, (N, C, L), jnp.float32)

    bound = 1.0 / np.sqrt(2 * KERNEL_SIZE)                           # torch Conv1d init bound
    conv_w = jax.random.uniform(kw, (1, 2, KERNEL_SIZE), jnp.float32, -bound, bound)
    conv_b = jax.random.uniform(kb, (1,), jnp.float32, -bound, bound)
    bn_gamma = 1.0 + 0.1 * jax.random.normal(kg, (1,), jnp.float32)
    bn_beta = 0.1 * jax.random.normal(kbe, (1,), jnp.float32)
    bn_mean = 0.1 * jax.random.normal(km, (1,), jnp.float32)
    bn_var = 1.0 + 0.1 * jnp.abs(jax.random.normal(kv, (1,), jnp.float32))

    out = jax.block_until_ready(
        spatial_gate(x, conv_w, conv_b, bn_gamma, bn_beta, bn_mean, bn_var))
    assert out.shape == (N, C, L) and out.dtype == jnp.float32

    ref = jax.block_until_ready(
        ref_forward(x, conv_w, conv_b, bn_gamma, bn_beta, bn_mean, bn_var))
    np.testing.assert_allclose(np.asarray(out), np.asarray(ref), rtol=1e-4, atol=1e-4)

    print("KERNEL_OK")
</pallas_src>

<mosaic_0001>
module attributes {stable_mosaic.version = 11 : i64} {
  func.func @_spatial_gate_kernel(%arg0: i32, %arg1: memref<128x128xf32, #tpu.memory_space<vmem>>, %arg2: memref<128x128xf32, #tpu.memory_space<vmem>>, %arg3: memref<1xf32, #tpu.memory_space<smem>>, %arg4: memref<1x16x128xf32, #tpu.memory_space<vmem>>, %arg5: memref<1x16x128xf32, #tpu.memory_space<vmem>>) attributes {dimension_semantics = [#tpu.dimension_semantics<parallel>], iteration_bounds = array<i64: 2>, scalar_prefetch = 0 : i64, scratch_operands = 0 : i64, tpu.core_type = #tpu.core_type<tc>, window_params = [{pipeline_mode = #tpu.pipeline_mode<synchronous>, transform_indices = @transform_0, window_bounds = array<i64: 128, 128>}, {pipeline_mode = #tpu.pipeline_mode<synchronous>, transform_indices = @transform_1, window_bounds = array<i64: 128, 128>}, {transform_indices = @transform_2, window_bounds = array<i64: 1>}, {transform_indices = @transform_3, window_bounds = array<i64: 1, 16, 128>}, {transform_indices = @transform_4, window_bounds = array<i64: 1, 16, 128>}]} {
    %c0 = arith.constant 0 : index
    %c0_0 = arith.constant 0 : index
    %c0_1 = arith.constant 0 : index
    %0 = vector.load %arg4[%c0, %c0_0, %c0_1] : memref<1x16x128xf32, #tpu.memory_space<vmem>>, vector<1x16x128xf32>
    %1 = vector.shape_cast %0 : vector<1x16x128xf32> to vector<16x128xf32>
    %cst = arith.constant dense<0xFF800000> : vector<128xf32>
    %2 = vector.multi_reduction <maximumf>, %1, %cst [0] : vector<16x128xf32> to vector<128xf32>
    %3 = vector.shape_cast %2 : vector<128xf32> to vector<1x128xf32>
    %cst_2 = arith.constant dense<0.000000e+00> : vector<128xf32>
    %4 = vector.multi_reduction <add>, %1, %cst_2 [0] : vector<16x128xf32> to vector<128xf32>
    %5 = vector.shape_cast %4 : vector<128xf32> to vector<1x128xf32>
    %cst_3 = arith.constant 1.600000e+01 : f32
    %6 = vector.broadcast %cst_3 : f32 to vector<1x128xf32>
    %7 = arith.divf %5, %6 : vector<1x128xf32>
    %c0_4 = arith.constant 0 : index
    %c0_5 = arith.constant 0 : index
    %8 = vector.load %arg1[%c0_4, %c0_5] : memref<128x128xf32, #tpu.memory_space<vmem>>, vector<128x128xf32>
    %cst_6 = arith.constant dense<0.000000e+00> : vector<1x128xf32>
    %9 = tpu.matmul %3, %8, %cst_6 {dimension_numbers = #tpu.dot_dimension_numbers<[1], [0], [0], [1], [0, 0, 1, 1], [], []>} : vector<1x128xf32>, vector<128x128xf32>, vector<1x128xf32> -> vector<1x128xf32>
    %c0_7 = arith.constant 0 : index
    %c0_8 = arith.constant 0 : index
    %10 = vector.load %arg2[%c0_7, %c0_8] : memref<128x128xf32, #tpu.memory_space<vmem>>, vector<128x128xf32>
    %cst_9 = arith.constant dense<0.000000e+00> : vector<1x128xf32>
    %11 = tpu.matmul %7, %10, %cst_9 {dimension_numbers = #tpu.dot_dimension_numbers<[1], [0], [0], [1], [0, 0, 1, 1], [], []>} : vector<1x128xf32>, vector<128x128xf32>, vector<1x128xf32> -> vector<1x128xf32>
    %12 = arith.addf %9, %11 : vector<1x128xf32>
    %c0_10 = arith.constant 0 : index
    %13 = memref.load %arg3[%c0_10] : memref<1xf32, #tpu.memory_space<smem>>
    %14 = vector.broadcast %13 : f32 to vector<1x128xf32>
    %15 = arith.addf %12, %14 : vector<1x128xf32>
    %cst_11 = arith.constant 0.000000e+00 : f32
    %16 = vector.broadcast %cst_11 : f32 to vector<1x128xf32>
    %17 = arith.subf %16, %15 : vector<1x128xf32>
    %18 = math.exp %17 : vector<1x128xf32>
    %cst_12 = arith.constant 1.000000e+00 : f32
    %19 = vector.broadcast %cst_12 : f32 to vector<1x128xf32>
    %20 = arith.addf %19, %18 : vector<1x128xf32>
    %cst_13 = arith.constant 1.000000e+00 : f32
    %21 = vector.broadcast %cst_13 : f32 to vector<1x128xf32>
    %22 = arith.divf %21, %20 : vector<1x128xf32>
    %23 = arith.mulf %15, %22 : vector<1x128xf32>
    %cst_14 = arith.constant 0.000000e+00 : f32
    %24 = vector.broadcast %cst_14 : f32 to vector<1x128xf32>
    %25 = arith.subf %24, %23 : vector<1x128xf32>
    %26 = math.exp %25 : vector<1x128xf32>
    %cst_15 = arith.constant 1.000000e+00 : f32
    %27 = vector.broadcast %cst_15 : f32 to vector<1x128xf32>
    %28 = arith.addf %27, %26 : vector<1x128xf32>
    %cst_16 = arith.constant 1.000000e+00 : f32
    %29 = vector.broadcast %cst_16 : f32 to vector<1x128xf32>
    %30 = arith.divf %29, %28 : vector<1x128xf32>
    %31 = vector.broadcast %30 : vector<1x128xf32> to vector<16x128xf32>
    %32 = arith.mulf %1, %31 : vector<16x128xf32>
    %c0_17 = arith.constant 0 : index
    %c0_18 = arith.constant 0 : index
    %c0_19 = arith.constant 0 : index
    %33 = vector.load %arg5[%c0_17, %c0_18, %c0_19] : memref<1x16x128xf32, #tpu.memory_space<vmem>>, vector<1x16x128xf32>
    %34 = vector.shape_cast %33 : vector<1x16x128xf32> to vector<16x128xf32>
    %35 = vector.shape_cast %32 : vector<16x128xf32> to vector<1x16x128xf32>
    tpu.vector_store %arg5[%c0_17, %c0_18, %c0_19], %35 {strides = array<i32>} : memref<1x16x128xf32, #tpu.memory_space<vmem>>, vector<1x16x128xf32>,
    return
  }
  func.func @transform_0(%arg0: i32) -> (i32, i32) {
    %c0_i32 = arith.constant 0 : i32
    %c0_i32_0 = arith.constant 0 : i32
    %c0_i32_1 = arith.constant 0 : i32
    return %c0_i32, %c0_i32_0 : i32, i32
  }
  func.func @transform_1(%arg0: i32) -> (i32, i32) {
    %c0_i32 = arith.constant 0 : i32
    %c0_i32_0 = arith.constant 0 : i32
    %c0_i32_1 = arith.constant 0 : i32
    return %c0_i32, %c0_i32_0 : i32, i32
  }
  func.func @transform_2(%arg0: i32) -> i32 {
    %c0_i32 = arith.constant 0 : i32
    %c0_i32_0 = arith.constant 0 : i32
    return %c0_i32 : i32
  }
  func.func @transform_3(%arg0: i32) -> (i32, i32, i32) {
    %c0_i32 = arith.constant 0 : i32
    %c0_i32_0 = arith.constant 0 : i32
    %c0_i32_1 = arith.constant 0 : i32
    return %arg0, %c0_i32, %c0_i32_0 : i32, i32, i32
  }
  func.func @transform_4(%arg0: i32) -> (i32, i32, i32) {
    %c0_i32 = arith.constant 0 : i32
    %c0_i32_0 = arith.constant 0 : i32
    %c0_i32_1 = arith.constant 0 : i32
    return %arg0, %c0_i32, %c0_i32_0 : i32, i32, i32
  }
}

</mosaic_0001>

<llo_original>
// kernel: tpu_custom_call.1
$region0: #{tpu_custom_call.1}
  #allocation0 [shape = 'u32[]', space=smem, size = 0x4, offset = 0x4, fixed_abs, tag = 'smem constant byte address 0x4 - core index']
  #allocation1 [shape = 'u32[144,128]{1,0:T(1,128)}', space=vmem, size = 0x12000, scoped, tag = 'internal scratch']
  #allocation2 [shape = 'f32[1]{0:T(128)S(6)}', space=smem, size = 0x200, scoped, tag = 'scoped memory for tpu_custom_call.1']
  %s0 = inlined_call_operand.hbm [shape: f32[128,128], index: 0, kind: input, shape index: {}]
  %s1 = inlined_call_operand.hbm [shape: f32[128,128], index: 1, kind: input, shape index: {}]
  %s2 = inlined_call_operand.<no memory space> [shape: f32[1], index: 2, kind: input, shape index: {}]
  %s3 = inlined_call_operand.hbm [shape: f32[2,16,128], index: 3, kind: input, shape index: {}]
  %s4 = inlined_call_operand.hbm [shape: f32[2,16,128], index: 4, kind: output, shape index: {}]
  %s5 = sld [smem:[#allocation0]]
  $region61: #{tpu_custom_call.1} parent=0
    _
  %s7 = ssub.s32 1, %s5
  %s8 = scalar_select 0, %s7, %s5
  %9 = sst [smem:[#allocation2]] %s2
  $region1: #{tpu_custom_call.1} parent=0
    #allocation3 [shape = 'u8[65536]{0}', space=vmem, size = 0x10000, scoped, tag = 'input window, operand 0, single buffered']
    #allocation4 [shape = 's32[2]{0}', space=sflag, size = 0x8, scoped, tag = 'scoped memory for tpu_custom_call.1']
    #allocation5 [shape = 's32[2]{0}', space=sflag, size = 0x8, scoped, tag = 'scoped memory for tpu_custom_call.1']
    #allocation6 [shape = 'u8[65536]{0}', space=vmem, size = 0x10000, scoped, tag = 'input window, operand 1, single buffered']
    #allocation7 [shape = 's32[1]{0}', space=sflag, size = 0x4, scoped, tag = 'scoped memory for tpu_custom_call.1']
    #allocation8 [shape = 'u8[16384]{0}', space=vmem, size = 0x4000, scoped, tag = 'input window, operand 3']
    #allocation9 [shape = 'u8[16384]{0}', space=vmem, size = 0x4000, scoped, tag = 'output window, operand 0']
    %10 = vsyncpa [#allocation4], 0
    %11 = vsyncpa [#allocation7], 0
    %12 = vsyncpa [#allocation5], 0
    %s13 = scalar_lea.sflag [#allocation5], 1
    %14 = vsyncpa %s13, 0
    loop: start=0, step=1, limit=4
    $region2: #{tpu_custom_call.1} parent=1 // loop_pre_header
      _
    $region3: #{tpu_custom_call.1} parent=1 // loop_header
      %s16 = sphi 0, %s20
      %p17 = scmp.ge.s32.totalorder %s16, 4
      %s24 = sphi 0, %s24
      %s26 = sphi 0, %s24
      %s27 = sphi 0, %s26
      %s41 = sphi 0, %s27
      %s45 = sphi 0, %s45
      %s47 = sphi 0, %s45
      %s48 = sphi 0, %s47
      %s62 = sphi 0, %s48
      %s66 = sphi 0, %s66
      %s68 = sphi 0, %s66
      %s69 = sphi 0, %s68
      %s83 = sphi 0, %s69
      %s89 = sphi 0, %s91
      %s92 = sphi 0, %s89
      %s93 = sphi 0, %s92
      %s109 = sphi 0, %s93
      %s115 = sphi 0, %s117
      %s118 = sphi 0, %s115
      %s119 = sphi 0, %s118
      %s135 = sphi 0, %s119
    $region4: #{tpu_custom_call.1} parent=1 // loop_header_branch
      %19 = sbr.rel (%p17) target = $region8
    $region5: #{tpu_custom_call.1} parent=1 // loop_body
      %s21 = ssub.s32 %s16, 1
      %s22 = ssub.s32 %s16, 2
      %s23 = sadd.s32 %s16, 1
      %s25 = sadd.s32 %s24, 1
      %p28 = scmp.eq.s32.totalorder %s16, 1
      %p29 = scmp.ne.s32.totalorder %s24, %s26
      %p30 = scmp.eq.s32.totalorder %s16, 0
      %p31 = por %p29, %p30
      %p32 = scmp.ne.s32.totalorder %s24, %s26
      %p33 = scmp.eq.s32.totalorder %s21, 1
      %p34 = por %p32, %p33
      %p35 = scmp.ne.s32.totalorder %s26, %s27
      %p36 = scmp.eq.s32.totalorder %s21, 0
      %p37 = por %p35, %p36
      %p38 = scmp.ne.s32.totalorder %s26, %s27
      %p39 = scmp.eq.s32.totalorder %s22, 1
      %p40 = por %p38, %p39
      %p42 = scmp.ne.s32.totalorder %s27, %s41
      %p43 = scmp.eq.s32.totalorder %s22, 0
      %p44 = por %p42, %p43
      %s46 = sadd.s32 %s45, 1
      %p49 = scmp.eq.s32.totalorder %s16, 1
      %p50 = scmp.ne.s32.totalorder %s45, %s47
      %p51 = scmp.eq.s32.totalorder %s16, 0
      %p52 = por %p50, %p51
      %p53 = scmp.ne.s32.totalorder %s45, %s47
      %p54 = scmp.eq.s32.totalorder %s21, 1
      %p55 = por %p53, %p54
      %p56 = scmp.ne.s32.totalorder %s47, %s48
      %p57 = scmp.eq.s32.totalorder %s21, 0
      %p58 = por %p56, %p57
      %p59 = scmp.ne.s32.totalorder %s47, %s48
      %p60 = scmp.eq.s32.totalorder %s22, 1
      %p61 = por %p59, %p60
      %p63 = scmp.ne.s32.totalorder %s48, %s62
      %p64 = scmp.eq.s32.totalorder %s22, 0
      %p65 = por %p63, %p64
      %s67 = sadd.s32 %s66, 1
      %p70 = scmp.eq.s32.totalorder %s16, 1
      %p71 = scmp.ne.s32.totalorder %s66, %s68
      %p72 = scmp.eq.s32.totalorder %s16, 0
      %p73 = por %p71, %p72
      %p74 = scmp.ne.s32.totalorder %s66, %s68
      %p75 = scmp.eq.s32.totalorder %s21, 1
      %p76 = por %p74, %p75
      %p77 = scmp.ne.s32.totalorder %s68, %s69
      %p78 = scmp.eq.s32.totalorder %s21, 0
      %p79 = por %p77, %p78
      %p80 = scmp.ne.s32.totalorder %s68, %s69
      %p81 = scmp.eq.s32.totalorder %s22, 1
      %p82 = por %p80, %p81
      %p84 = scmp.ne.s32.totalorder %s69, %s83
      %p85 = scmp.eq.s32.totalorder %s22, 0
      %p86 = por %p84, %p85
      %s87 = ssub.s32 %s16, %s23
      %p88 = scmp.eq.s32.totalorder %s87, 0
      %s90 = sadd.s32 %s89, 1
      %s91 = scalar_select %p88, %s89, %s90
      %p94 = pneg %p88
      %p95 = scmp.eq.s32.totalorder %s16, 1
      %p96 = por %p94, %p95
      %p97 = scmp.ne.s32.totalorder %s89, %s92
      %p98 = scmp.eq.s32.totalorder %s16, 0
      %p99 = por %p97, %p98
      %p100 = scmp.ne.s32.totalorder %s89, %s92
      %p101 = scmp.eq.s32.totalorder %s21, 1
      %p102 = por %p100, %p101
      %p103 = scmp.ne.s32.totalorder %s92, %s93
      %p104 = scmp.eq.s32.totalorder %s21, 0
      %p105 = por %p103, %p104
      %p106 = scmp.ne.s32.totalorder %s92, %s93
      %p107 = scmp.eq.s32.totalorder %s22, 1
      %p108 = por %p106, %p107
      %p110 = scmp.ne.s32.totalorder %s93, %s109
      %p111 = scmp.eq.s32.totalorder %s22, 0
      %p112 = por %p110, %p111
      %s113 = ssub.s32 %s16, %s23
      %p114 = scmp.eq.s32.totalorder %s113, 0
      %s116 = sadd.s32 %s115, 1
      %s117 = scalar_select %p114, %s115, %s116
      %p120 = pneg %p114
      %p121 = scmp.eq.s32.totalorder %s16, 1
      %p122 = por %p120, %p121
      %p123 = scmp.ne.s32.totalorder %s115, %s118
      %p124 = scmp.eq.s32.totalorder %s16, 0
      %p125 = por %p123, %p124
      %p126 = scmp.ne.s32.totalorder %s115, %s118
      %p127 = scmp.eq.s32.totalorder %s21, 1
      %p128 = por %p126, %p127
      %p129 = scmp.ne.s32.totalorder %s118, %s119
      %p130 = scmp.eq.s32.totalorder %s21, 0
      %p131 = por %p129, %p130
      %p132 = scmp.ne.s32.totalorder %s118, %s119
      %p133 = scmp.eq.s32.totalorder %s22, 1
      %p134 = por %p132, %p133
      %p136 = scmp.ne.s32.totalorder %s119, %s135
      %p137 = scmp.eq.s32.totalorder %s22, 0
      %p138 = por %p136, %p137
      %p139 = scmp.le.s32.totalorder 1, %s16
      %p140 = scmp.lt.s32.totalorder %s16, 3
      %p141 = pnand %p139, %p140
      %p142 = pneg %p141
      // Predicated region
      $region9: #{tpu_custom_call.1} parent=5 // pred_check
        _
      $region10: #{tpu_custom_call.1} parent=5 // pred_check_branch
        %144 = sbr.rel (%p141) target = $region12
      $region11: #{tpu_custom_call.1} parent=5 // pred_region
        %s145 = ssub.s32 %s16, 1
        // Predicated region
        $region13: #{tpu_custom_call.1} parent=11 // pred_check
          %p146 = pneg %p37
        $region14: #{tpu_custom_call.1} parent=11 // pred_check_branch
          %148 = sbr.rel (%p146) target = $region16
        $region15: #{tpu_custom_call.1} parent=11 // pred_region
          %s150 = ssub.s32 2048, 2048
          %151 = vsyncadd [#allocation4], %s150
          %s152 = sshll.u32 [#allocation3], 4
          %s153 = int_to_ptr.vmem [resolvable:$true] %s152
          %158 = dma.hbm_to_vmem [thread:$0]  %s0, 2048, %s153, [#allocation4], 128, 128, 8
        $region16: #{tpu_custom_call.1} parent=11 // pred_fallthru
          _
        // Predicated region
        $region17: #{tpu_custom_call.1} parent=11 // pred_check
          %p159 = pneg %p58
        $region18: #{tpu_custom_call.1} parent=11 // pred_check_branch
          %161 = sbr.rel (%p159) target = $region20
        $region19: #{tpu_custom_call.1} parent=11 // pred_region
          %s163 = ssub.s32 2048, 2048
          %164 = vsyncadd [#allocation7], %s163
          %s165 = sshll.u32 [#allocation6], 4
          %s166 = int_to_ptr.vmem [resolvable:$true] %s165
          %171 = dma.hbm_to_vmem [thread:$0]  %s1, 2048, %s166, [#allocation7], 128, 128, 8
        $region20: #{tpu_custom_call.1} parent=11 // pred_fallthru
          _
        // Predicated region
        $region21: #{tpu_custom_call.1} parent=11 // pred_check
          %p172 = pneg %p79
        $region22: #{tpu_custom_call.1} parent=11 // pred_check_branch
          %174 = sbr.rel (%p172) target = $region24
        $region23: #{tpu_custom_call.1} parent=11 // pred_region
          _
        $region24: #{tpu_custom_call.1} parent=11 // pred_fallthru
          _
      $region12: #{tpu_custom_call.1} parent=5 // pred_fallthru
        _
      %p175 = scmp.lt.s32.totalorder %s16, 2
      // Predicated region
      $region25: #{tpu_custom_call.1} parent=5 // pred_check
        %p176 = pneg %p175
      $region26: #{tpu_custom_call.1} parent=5 // pred_check_branch
        %178 = sbr.rel (%p176) target = $region28
      $region27: #{tpu_custom_call.1} parent=5 // pred_region
        // Predicated region
        $region29: #{tpu_custom_call.1} parent=27 // pred_check
          %p179 = pneg %p99
        $region30: #{tpu_custom_call.1} parent=27 // pred_check_branch
          %181 = sbr.rel (%p179) target = $region32
        $region31: #{tpu_custom_call.1} parent=27 // pred_region
          %s182 = sand.u32 %s16, 1
          %s183 = scalar_lea.sflag [#allocation4], %s182
          %s184 = sand.u32 %s89, 1
          %s185 = smul.addr %s184, 16
          %s186 = scalar_lea.vmem [#allocation8], %s185
          %s188 = ssub.s32 256, 256
          %189 = vsyncadd %s183, %s188
          %s190 = smul.addr %s16, 2
          %s191 = smul.addr %s190, 128
          %s192 = scalar_lea.hbm %s3, %s191
          %s193 = sshll.u32 %s186, 4
          %s194 = int_to_ptr.vmem [resolvable:$true] %s193
          %199 = dma.hbm_to_vmem [thread:$0]  %s192, 256, %s194, %s183, 128, 128, 8
        $region32: #{tpu_custom_call.1} parent=27 // pred_fallthru
          _
      $region28: #{tpu_custom_call.1} parent=5 // pred_fallthru
        _
      %p200 = scmp.le.s32.totalorder 1, %s16
      %p201 = scmp.lt.s32.totalorder %s16, 3
      %p202 = pnand %p200, %p201
      %p203 = pneg %p202
      // Predicated region
      $region33: #{tpu_custom_call.1} parent=5 // pred_check
        _
      $region34: #{tpu_custom_call.1} parent=5 // pred_check_branch
        %205 = sbr.rel (%p202) target = $region36
      $region35: #{tpu_custom_call.1} parent=5 // pred_region
        %s206 = ssub.s32 %s16, 1
        // Predicated region
        $region37: #{tpu_custom_call.1} parent=35 // pred_check
          %p207 = pneg %p37
        $region38: #{tpu_custom_call.1} parent=35 // pred_check_branch
          %209 = sbr.rel (%p207) target = $region40
        $region39: #{tpu_custom_call.1} parent=35 // pred_region
          %210 = dma.done [#allocation4], 2048
        $region40: #{tpu_custom_call.1} parent=35 // pred_fallthru
          _
        // Predicated region
        $region41: #{tpu_custom_call.1} parent=35 // pred_check
          %p211 = pneg %p58
        $region42: #{tpu_custom_call.1} parent=35 // pred_check_branch
          %213 = sbr.rel (%p211) target = $region44
        $region43: #{tpu_custom_call.1} parent=35 // pred_region
          %214 = dma.done [#allocation7], 2048
        $region44: #{tpu_custom_call.1} parent=35 // pred_fallthru
          _
        %s215 = sand.u32 %s21, 1
        %s216 = scalar_lea.sflag [#allocation4], %s215
        %s217 = sand.u32 %s92, 1
        %s218 = smul.addr %s217, 16
        %s219 = scalar_lea.vmem [#allocation8], %s218
        // Predicated region
        $region45: #{tpu_custom_call.1} parent=35 // pred_check
          %p220 = pneg %p105
        $region46: #{tpu_custom_call.1} parent=35 // pred_check_branch
          %222 = sbr.rel (%p220) target = $region48
        $region47: #{tpu_custom_call.1} parent=35 // pred_region
          %223 = dma.done %s216, 256
        $region48: #{tpu_custom_call.1} parent=35 // pred_fallthru
          _
        %p224 = pneg %p37
        %p225 = pneg %p34
        %p226 = pneg %p58
        %p227 = pneg %p55
        %p228 = pneg %p79
        %p229 = pneg %p76
        %s230 = sand.u32 %s21, 1
        %s231 = scalar_lea.sflag [#allocation4], %s230
        %s232 = sand.u32 %s92, 1
        %s233 = smul.addr %s232, 16
        %s234 = scalar_lea.vmem [#allocation8], %s233
        %p235 = pneg %p105
        %p236 = pneg %p102
        %p237 = pneg %p131
        %p238 = pneg %p128
        %s239 = sand.u32 %s118, 1
        %s240 = scalar_lea.sflag [#allocation5], %s239
        %s241 = sand.u32 %s118, 1
        %s242 = smul.addr %s241, 16
        %s243 = scalar_lea.vmem [#allocation9], %s242
        %v244 = vld [vmem:[%s219] sm:$0xff]
        %v245 = vld [vmem:[%s219 + $0x8] sm:$0xff]
        %v246 = vmax.f32 %v244, %v245
        %v247 = vrot.slane %v246, 4
        %v248 = vmax.f32 %v246, %v247
        %v249 = vrot.slane %v248, 2
        %v250 = vmax.f32 %v248, %v249
        %v251 = vrot.slane %v250, 1
        %v252 = vmax.f32 %v250, %v251
        %v253 = vadd.f32 %v244, %v245
        %v254 = vrot.slane %v253, 4
        %v255 = vadd.f32 %v253, %v254
        %v256 = vrot.slane %v255, 2
        %v257 = vadd.f32 %v255, %v256
        %v258 = vrot.slane %v257, 1
        %v259 = vadd.f32 %v257, %v258
        %v260 = vrcp.pop 16.0
        %v261 = vmul.f32 %v259, %v260
        %v262 = vld [vmem:[#allocation3] sm:$0xff]
        %v263 = vld [vmem:[#allocation3 + $0x8] sm:$0xff]
        %v264 = vld [vmem:[#allocation3 + $0x10] sm:$0xff]
        %v265 = vld [vmem:[#allocation3 + $0x18] sm:$0xff]
        %v266 = vld [vmem:[#allocation3 + $0x20] sm:$0xff]
        %v267 = vld [vmem:[#allocation3 + $0x28] sm:$0xff]
        %v268 = vld [vmem:[#allocation3 + $0x30] sm:$0xff]
        %v269 = vld [vmem:[#allocation3 + $0x38] sm:$0xff]
        %v270 = vld [vmem:[#allocation3 + $0x40] sm:$0xff]
        %v271 = vld [vmem:[#allocation3 + $0x48] sm:$0xff]
        %v272 = vld [vmem:[#allocation3 + $0x50] sm:$0xff]
        %v273 = vld [vmem:[#allocation3 + $0x58] sm:$0xff]
        %v274 = vld [vmem:[#allocation3 + $0x60] sm:$0xff]
        %v275 = vld [vmem:[#allocation3 + $0x68] sm:$0xff]
        %v276 = vld [vmem:[#allocation3 + $0x70] sm:$0xff]
        %v277 = vld [vmem:[#allocation3 + $0x78] sm:$0xff]
        %v278 = vld [vmem:[#allocation6] sm:$0xff]
        %v279 = vld [vmem:[#allocation6 + $0x8] sm:$0xff]
        %v280 = vld [vmem:[#allocation6 + $0x10] sm:$0xff]
        %v281 = vld [vmem:[#allocation6 + $0x18] sm:$0xff]
        %v282 = vld [vmem:[#allocation6 + $0x20] sm:$0xff]
        %v283 = vld [vmem:[#allocation6 + $0x28] sm:$0xff]
        %v284 = vld [vmem:[#allocation6 + $0x30] sm:$0xff]
        %v285 = vld [vmem:[#allocation6 + $0x38] sm:$0xff]
        %v286 = vld [vmem:[#allocation6 + $0x40] sm:$0xff]
        %v287 = vld [vmem:[#allocation6 + $0x48] sm:$0xff]
        %v288 = vld [vmem:[#allocation6 + $0x50] sm:$0xff]
        %v289 = vld [vmem:[#allocation6 + $0x58] sm:$0xff]
        %v290 = vld [vmem:[#allocation6 + $0x60] sm:$0xff]
        %v291 = vld [vmem:[#allocation6 + $0x68] sm:$0xff]
        %v292 = vld [vmem:[#allocation6 + $0x70] sm:$0xff]
        %v293 = vld [vmem:[#allocation6 + $0x78] sm:$0xff]
        %294 = vmatprep.subr.mxu0 0.0
        %295 = vmatpush1.msra.mxu0 %v278
        %296 = vmatprep.subr.mxu0 0.0
        %297 = vmatpush1.msra.mxu0 %v279
        %298 = vmatprep.subr.mxu0 0.0
        %299 = vmatpush1.msra.mxu0 %v280
        %300 = vmatprep.subr.mxu0 0.0
        %301 = vmatpush1.msra.mxu0 %v281
        %302 = vmatprep.subr.mxu0 0.0
        %303 = vmatpush1.msra.mxu0 %v282
        %304 = vmatprep.subr.mxu0 0.0
        %305 = vmatpush1.msra.mxu0 %v283
        %306 = vmatprep.subr.mxu0 0.0
        %307 = vmatpush1.msra.mxu0 %v284
        %308 = vmatprep.subr.mxu0 0.0
        %309 = vmatpush1.msra.mxu0 %v285
        %310 = vmatprep.subr.mxu0 0.0
        %311 = vmatpush1.msra.mxu0 %v286
        %312 = vmatprep.subr.mxu0 0.0
        %313 = vmatpush1.msra.mxu0 %v287
        %314 = vmatprep.subr.mxu0 0.0
        %315 = vmatpush1.msra.mxu0 %v288
        %316 = vmatprep.subr.mxu0 0.0
        %317 = vmatpush1.msra.mxu0 %v289
        %318 = vmatprep.subr.mxu0 0.0
        %319 = vmatpush1.msra.mxu0 %v290
        %320 = vmatprep.subr.mxu0 0.0
        %321 = vmatpush1.msra.mxu0 %v291
        %322 = vmatprep.subr.mxu0 0.0
        %323 = vmatpush1.msra.mxu0 %v292
        %324 = vmatprep.subr.mxu0 0.0
        %325 = vmatpush1.msra.mxu0 %v293
        %326 = vmatprep.subr.mxu0 0.0
        %327 = vmatpush1.msra.mxu0 0.0
        %328 = vmatprep.subr.mxu0 0.0
        %329 = vmatpush1.msra.mxu0 0.0
        %330 = vmatprep.subr.mxu0 0.0
        %331 = vmatpush1.msra.mxu0 0.0
        %332 = vmatprep.subr.mxu0 0.0
        %333 = vmatpush1.msra.mxu0 0.0
        %334 = vmatprep.subr.mxu0 0.0
        %335 = vmatpush1.msra.mxu0 0.0
        %336 = vmatprep.subr.mxu0 0.0
        %337 = vmatpush1.msra.mxu0 0.0
        %338 = vmatprep.subr.mxu0 0.0
        %339 = vmatpush1.msra.mxu0 0.0
        %340 = vmatprep.subr.mxu0 0.0
        %341 = vmatpush1.msra.mxu0 0.0
        %342 = vmatprep.subr.mxu0 0.0
        %343 = vmatpush1.msra.mxu0 0.0
        %344 = vmatprep.subr.mxu0 0.0
        %345 = vmatpush1.msra.mxu0 0.0
        %346 = vmatprep.subr.mxu0 0.0
        %347 = vmatpush1.msra.mxu0 0.0
        %348 = vmatprep.subr.mxu0 0.0
        %349 = vmatpush1.msra.mxu0 0.0
        %350 = vmatprep.subr.mxu0 0.0
        %351 = vmatpush1.msra.mxu0 0.0
        %352 = vmatprep.subr.mxu0 0.0
        %353 = vmatpush1.msra.mxu0 0.0
        %354 = vmatprep.subr.mxu0 0.0
        %355 = vmatpush1.msra.mxu0 0.0
        %356 = vmatprep.subr.mxu0 0.0
        %357 = vmatpush1.msra.mxu0 0.0
        %358 = vmatprep.mubr.f32.mxu0 0.0
        %359 = vmatmul.mubr.f32.gmra.mrb[0].mxu0 %v261
        %v360 = vpop.f32.mrb[0].mxu0
        %v361 = vadd.f32 0.0, %v360
        %v362 = vpop.f32.mrb[0].mxu0
        %363 = vdwg.mxu0
        %364 = vmatprep.subr.mxu0 0.0
        %365 = vmatpush1.msra.mxu0 %v262
        %366 = vmatprep.subr.mxu0 0.0
        %367 = vmatpush1.msra.mxu0 %v263
        %368 = vmatprep.subr.mxu0 0.0
        %369 = vmatpush1.msra.mxu0 %v264
        %370 = vmatprep.subr.mxu0 0.0
        %371 = vmatpush1.msra.mxu0 %v265
        %372 = vmatprep.subr.mxu0 0.0
        %373 = vmatpush1.msra.mxu0 %v266
        %374 = vmatprep.subr.mxu0 0.0
        %375 = vmatpush1.msra.mxu0 %v267
        %376 = vmatprep.subr.mxu0 0.0
        %377 = vmatpush1.msra.mxu0 %v268
        %378 = vmatprep.subr.mxu0 0.0
        %379 = vmatpush1.msra.mxu0 %v269
        %380 = vmatprep.subr.mxu0 0.0
        %381 = vmatpush1.msra.mxu0 %v270
        %382 = vmatprep.subr.mxu0 0.0
        %383 = vmatpush1.msra.mxu0 %v271
        %384 = vmatprep.subr.mxu0 0.0
        %385 = vmatpush1.msra.mxu0 %v272
        %386 = vmatprep.subr.mxu0 0.0
        %387 = vmatpush1.msra.mxu0 %v273
        %388 = vmatprep.subr.mxu0 0.0
        %389 = vmatpush1.msra.mxu0 %v274
        %390 = vmatprep.subr.mxu0 0.0
        %391 = vmatpush1.msra.mxu0 %v275
        %392 = vmatprep.subr.mxu0 0.0
        %393 = vmatpush1.msra.mxu0 %v276
        %394 = vmatprep.subr.mxu0 0.0
        %395 = vmatpush1.msra.mxu0 %v277
        %396 = vmatprep.subr.mxu0 0.0
        %397 = vmatpush1.msra.mxu0 0.0
        %398 = vmatprep.subr.mxu0 0.0
        %399 = vmatpush1.msra.mxu0 0.0
        %400 = vmatprep.subr.mxu0 0.0
        %401 = vmatpush1.msra.mxu0 0.0
        %402 = vmatprep.subr.mxu0 0.0
        %403 = vmatpush1.msra.mxu0 0.0
        %404 = vmatprep.subr.mxu0 0.0
        %405 = vmatpush1.msra.mxu0 0.0
        %406 = vmatprep.subr.mxu0 0.0
        %407 = vmatpush1.msra.mxu0 0.0
        %408 = vmatprep.subr.mxu0 0.0
        %409 = vmatpush1.msra.mxu0 0.0
        %410 = vmatprep.subr.mxu0 0.0
        %411 = vmatpush1.msra.mxu0 0.0
        %412 = vmatprep.subr.mxu0 0.0
        %413 = vmatpush1.msra.mxu0 0.0
        %414 = vmatprep.subr.mxu0 0.0
        %415 = vmatpush1.msra.mxu0 0.0
        %416 = vmatprep.subr.mxu0 0.0
        %417 = vmatpush1.msra.mxu0 0.0
        %418 = vmatprep.subr.mxu0 0.0
        %419 = vmatpush1.msra.mxu0 0.0
        %420 = vmatprep.subr.mxu0 0.0
        %421 = vmatpush1.msra.mxu0 0.0
        %422 = vmatprep.subr.mxu0 0.0
        %423 = vmatpush1.msra.mxu0 0.0
        %424 = vmatprep.subr.mxu0 0.0
        %425 = vmatpush1.msra.mxu0 0.0
        %426 = vmatprep.subr.mxu0 0.0
        %427 = vmatpush1.msra.mxu0 0.0
        %428 = vmatprep.mubr.f32.mxu0 0.0
        %429 = vmatmul.mubr.f32.gmra.mrb[0].mxu0 %v252
        %v430 = vpop.f32.mrb[0].mxu0
        %v431 = vadd.f32 %v361, %v430
        %v432 = vpop.f32.mrb[0].mxu0
        %433 = vdwg.mxu0
        %s434 = sld [smem:[#allocation2]]
        %v435 = vstv %s434
        %v436 = vadd.f32 %v431, %v435
        %v437 = vsub.f32 0.0, %v436
        %v438 = vmul.f32 %v437, 1.442695
        %v439 = vpow.pop %v438
        %v440 = vadd.f32 %v439, 1.0
        %v441 = vrcp.pop %v440
        %v442 = vmul.f32 1.0, %v441
        %v443 = vmul.f32 %v436, %v442
        %v444 = vsub.f32 0.0, %v443
        %v445 = vmul.f32 %v444, 1.442695
        %v446 = vpow.pop %v445
        %v447 = vadd.f32 %v446, 1.0
        %v448 = vrcp.pop %v447
        %v449 = vmul.f32 1.0, %v448
        %v450 = vlaneseq
        %v451 = vshrl.u32 %v450, 7
        %v452 = vsub.s32 0, %v451
        %v453 = vrot.slane %v449, %v452
        %v454 = vmul.f32 %v244, %v453
        %v455 = vmul.f32 %v245, %v453
        %456 = vst [vmem:[%s243] sm:$0xff] %v454
        %457 = vst [vmem:[%s243 + $0x8] sm:$0xff] %v455
        %s458 = sand.u32 %s118, 1
        %s459 = scalar_lea.sflag [#allocation5], %s458
        %s460 = sand.u32 %s118, 1
        %s461 = smul.addr %s460, 16
        %s462 = scalar_lea.vmem [#allocation9], %s461
        // Predicated region
        $region49: #{tpu_custom_call.1} parent=35 // pred_check
          %p463 = pneg %p128
        $region50: #{tpu_custom_call.1} parent=35 // pred_check_branch
          %465 = sbr.rel (%p463) target = $region52
        $region51: #{tpu_custom_call.1} parent=35 // pred_region
          %s467 = ssub.s32 256, 256
          %468 = vsyncadd %s459, %s467
          %s469 = smul.addr %s21, 2
          %s470 = smul.addr %s469, 128
          %s471 = scalar_lea.hbm %s4, %s470
          %s472 = sshll.u32 %s462, 4
          %s473 = int_to_ptr.vmem [resolvable:$true] %s472
          %478 = dma.vmem_to_hbm [thread:$0]  %s473, 256, %s471, %s459, 128, 128, 8
        $region52: #{tpu_custom_call.1} parent=35 // pred_fallthru
          _
      $region36: #{tpu_custom_call.1} parent=5 // pred_fallthru
        _
      %p479 = scmp.le.s32.totalorder 2, %s16
      // Predicated region
      $region53: #{tpu_custom_call.1} parent=5 // pred_check
        %p480 = pneg %p479
      $region54: #{tpu_custom_call.1} parent=5 // pred_check_branch
        %482 = sbr.rel (%p480) target = $region56
      $region55: #{tpu_custom_call.1} parent=5 // pred_region
        %s483 = ssub.s32 %s16, 2
        // Predicated region
        $region57: #{tpu_custom_call.1} parent=55 // pred_check
          %p484 = pneg %p134
        $region58: #{tpu_custom_call.1} parent=55 // pred_check_branch
          %486 = sbr.rel (%p484) target = $region60
        $region59: #{tpu_custom_call.1} parent=55 // pred_region
          %s487 = sand.u32 %s119, 1
          %s488 = scalar_lea.sflag [#allocation5], %s487
          %s489 = sand.u32 %s119, 1
          %s490 = smul.addr %s489, 16
          %s491 = scalar_lea.vmem [#allocation9], %s490
          %492 = dma.done %s488, 256
        $region60: #{tpu_custom_call.1} parent=55 // pred_fallthru
          _
      $region56: #{tpu_custom_call.1} parent=5 // pred_fallthru
        _
    $region6: #{tpu_custom_call.1} parent=1 // loop_footer
      %s20 = sadd.s32 1, %s16
    $region7: #{tpu_custom_call.1} parent=1 // loop_footer_branch
      %15 = sbr.rel target = $region3
    $region8: #{tpu_custom_call.1} parent=1 // loop_exit
      _
    %493 = vsyncpa [#allocation4], 1
    %s494 = scalar_lea.sflag [#allocation4], 1
    %495 = vsyncpa %s494, 1
    %496 = vsyncpa [#allocation7], 1
    %497 = vsyncpa [#allocation5], 1
    %s498 = scalar_lea.sflag [#allocation5], 1
    %499 = vsyncpa %s498, 1

</llo_original>
